<compile_context>
chip_gen: v7x
topology: tpu7x:2x2x1
jax: 0.10.0
libtpu: 0.0.40
codegen_flags: <defaults>
</compile_context>

<pallas_src>
import functools

import jax
import jax.numpy as jnp
from jax.experimental import pallas as pl
from jax.experimental.pallas import tpu as pltpu


def _focal_loss_kernel(x_ref, t_ref, out_ref, *, gamma, ignore_index, n_rows):
    x = x_ref[...].astype(jnp.float32)          # (tn, C) logits tile
    t = t_ref[...]                              # (tn, 1) int32 targets
    tn, C = x.shape

    # --- log-softmax pieces: one exp per element, one log per row ---
    m = jnp.max(x, axis=1, keepdims=True)
    shifted = x - m
    lse = jnp.log(jnp.sum(jnp.exp(shifted), axis=1, keepdims=True))   # (tn, 1)

    # --- gather target column FIRST (one-hot select; no dynamic lane gather),
    #     then apply the focal modulation on the (tn, 1) column only ---
    cols = jax.lax.broadcasted_iota(jnp.int32, (tn, C), 1)
    onehot = (cols == t).astype(jnp.float32)    # ignore_index rows -> all zero
    picked_shift = jnp.sum(onehot * shifted, axis=1, keepdims=True)   # (tn, 1)
    log_pt = picked_shift - lse                                       # (tn, 1)
    pt = jnp.exp(log_pt)                                              # 1 exp/row
    one_minus = 1.0 - pt

    if float(gamma).is_integer() and 0 <= int(gamma) <= 8:
        modf = jnp.ones_like(one_minus)
        for _ in range(int(gamma)):             # gamma=2 -> (1-pt)*(1-pt), VPU only
            modf = modf * one_minus
    else:
        modf = jnp.power(one_minus, jnp.float32(gamma))   # only on (tn, 1)
    per_row = -(modf * log_pt)                                        # (tn, 1)

    # --- validity: row actually exists (no host padding) and not ignored.
    #     Use where (not multiply) so garbage padded rows can't inject NaN. ---
    row0 = pl.program_id(0) * tn
    rows = row0 + jax.lax.broadcasted_iota(jnp.int32, (tn, 1), 0)
    valid = (rows < n_rows) & (t != ignore_index)
    per_row = jnp.where(valid, per_row, 0.0)
    validf = valid.astype(jnp.float32)

    p_sum = jnp.sum(per_row)
    p_cnt = jnp.sum(validf)

    # --- write this tile's partials into its own (8, 128) output slab ---
    r = jax.lax.broadcasted_iota(jnp.int32, (8, 128), 0)
    c = jax.lax.broadcasted_iota(jnp.int32, (8, 128), 1)
    slab = (jnp.where((r == 0) & (c == 0), p_sum, 0.0)
            + jnp.where((r == 0) & (c == 1), p_cnt, 0.0))
    out_ref[0] = slab


def _auto_tile_n(n_rows, n_cols, itemsize):
    """Pick a row tile so one logits buffer is ~2 MiB (good HBM streaming)."""
    target_bytes = 2 * 1024 * 1024
    t = target_bytes // max(1, n_cols * itemsize)
    t = max(8, min(1024, int(t)))
    t = (t // 8) * 8
    n_pad8 = ((n_rows + 7) // 8) * 8
    return max(8, min(t, n_pad8))


def focal_loss(logits, targets, *, gamma=2.0, ignore_index=-100, tile_n=None):
    """Pallas TPU focal loss, reduction='mean', weight=None.

    logits : float array [N, C] (f32 or bf16)
    targets: int array   [N]
    returns: scalar float32 (NaN if every target == ignore_index, like PyTorch)
    """
    N, C = logits.shape
    targets2d = targets.astype(jnp.int32).reshape(N, 1)

    itemsize = jnp.dtype(logits.dtype).itemsize
    if tile_n is None:
        tile_n = _auto_tile_n(N, C, itemsize)
    else:
        tile_n = max(8, (int(tile_n) // 8) * 8)
        tile_n = min(tile_n, ((N + 7) // 8) * 8)

    num_tiles = -(-N // tile_n)

    kernel = functools.partial(
        _focal_loss_kernel,
        gamma=float(gamma), ignore_index=int(ignore_index), n_rows=int(N))

    partials = pl.pallas_call(
        kernel,
        out_shape=jax.ShapeDtypeStruct((num_tiles, 8, 128), jnp.float32),
        grid_spec=pltpu.PrefetchScalarGridSpec(
            num_scalar_prefetch=0,
            grid=(num_tiles,),
            in_specs=[
                pl.BlockSpec((tile_n, C), lambda i: (i, 0)),
                pl.BlockSpec((tile_n, 1), lambda i: (i, 0)),
            ],
            out_specs=pl.BlockSpec((1, 8, 128), lambda i: (i, 0, 0)),
        ),
        compiler_params=pltpu.CompilerParams(
            dimension_semantics=("parallel",),
            vmem_limit_bytes=48 * 1024 * 1024),
    )(logits, targets2d)

    total = jnp.sum(partials[:, 0, 0])
    count = jnp.sum(partials[:, 0, 1])
    # NOTE: 0/0 -> NaN when all targets are ignored, matching torch nll_loss mean.
    return total / count


def _focal_loss_ref(logits, targets, gamma=2.0, ignore_index=-100):
    """Pure-JAX reference matching the PyTorch module."""
    logp = jax.nn.log_softmax(logits.astype(jnp.float32), axis=1)
    pt = jnp.exp(logp)
    mod = (1.0 - pt) ** gamma * logp
    valid = targets != ignore_index
    safe_t = jnp.where(valid, targets, 0)
    picked = jnp.take_along_axis(mod, safe_t[:, None], axis=1)[:, 0]
    per = -picked * valid.astype(jnp.float32)
    return jnp.sum(per) / jnp.sum(valid.astype(jnp.float32))


if __name__ == "__main__":
    key = jax.random.PRNGKey(0)
    k1, k2, k3, k4 = jax.random.split(key, 4)

    # --- test 1: small, single tile, exercises ignore_index ---
    N, C = 16, 32
    logits = jax.random.normal(k1, (N, C), dtype=jnp.float32)
    targets = jax.random.randint(k2, (N,), 0, C, dtype=jnp.int32)
    targets = targets.at[3].set(-100)

    loss = focal_loss(logits, targets, gamma=2.0, ignore_index=-100)
    loss = jax.block_until_ready(loss)
    ref = _focal_loss_ref(logits, targets, gamma=2.0, ignore_index=-100)
    assert jnp.allclose(loss, ref, rtol=1e-5, atol=1e-5), (loss, ref)

    # --- test 2: multiple tiles + ragged last tile (N not multiple of tile_n),
    #     exercises in-kernel row masking and the parallel partial reduction ---
    N2, C2 = 300, 24
    logits2 = jax.random.normal(k3, (N2, C2), dtype=jnp.float32)
    targets2 = jax.random.randint(k4, (N2,), 0, C2, dtype=jnp.int32)
    targets2 = targets2.at[0].set(-100).at[123].set(-100)

    loss2 = focal_loss(logits2, targets2, gamma=2.0, ignore_index=-100,
                       tile_n=64)
    loss2 = jax.block_until_ready(loss2)
    ref2 = _focal_loss_ref(logits2, targets2, gamma=2.0, ignore_index=-100)
    assert jnp.allclose(loss2, ref2, rtol=1e-5, atol=1e-5), (loss2, ref2)

    print("KERNEL_OK")
</pallas_src>

<mosaic_0001>
module attributes {stable_mosaic.version = 11 : i64} {
  func.func @_focal_loss_kernel(%arg0: i32, %arg1: memref<16x32xf32, #tpu.memory_space<vmem>>, %arg2: memref<16x1xi32, #tpu.memory_space<vmem>>, %arg3: memref<1x8x128xf32, #tpu.memory_space<vmem>>) attributes {dimension_semantics = [#tpu.dimension_semantics<parallel>], iteration_bounds = array<i64: 1>, scalar_prefetch = 0 : i64, scratch_operands = 0 : i64, tpu.core_type = #tpu.core_type<tc>, window_params = [{transform_indices = @transform_0, window_bounds = array<i64: 16, 32>}, {transform_indices = @transform_1, window_bounds = array<i64: 16, 1>}, {transform_indices = @transform_2, window_bounds = array<i64: 1, 8, 128>}]} {
    %c0 = arith.constant 0 : index
    %c0_0 = arith.constant 0 : index
    %0 = vector.load %arg1[%c0, %c0_0] : memref<16x32xf32, #tpu.memory_space<vmem>>, vector<16x32xf32>
    %c0_1 = arith.constant 0 : index
    %c0_2 = arith.constant 0 : index
    %1 = vector.load %arg2[%c0_1, %c0_2] : memref<16x1xi32, #tpu.memory_space<vmem>>, vector<16x1xi32>
    %cst = arith.constant dense<0xFF800000> : vector<16xf32>
    %2 = vector.multi_reduction <maximumf>, %0, %cst [1] : vector<16x32xf32> to vector<16xf32>
    %3 = vector.shape_cast %2 : vector<16xf32> to vector<16x1xf32>
    %4 = vector.broadcast %3 : vector<16x1xf32> to vector<16x32xf32>
    %5 = arith.subf %0, %4 : vector<16x32xf32>
    %6 = math.exp %5 : vector<16x32xf32>
    %cst_3 = arith.constant dense<0.000000e+00> : vector<16xf32>
    %7 = vector.multi_reduction <add>, %6, %cst_3 [1] : vector<16x32xf32> to vector<16xf32>
    %8 = vector.shape_cast %7 : vector<16xf32> to vector<16x1xf32>
    %9 = math.log %8 : vector<16x1xf32>
    %10 = tpu.iota {dimensions = array<i32: 1>} : vector<16x32xi32>
    %11 = vector.broadcast %1 : vector<16x1xi32> to vector<16x32xi32>
    %12 = arith.cmpi eq, %10, %11 : vector<16x32xi32>
    %13 = arith.extui %12 : vector<16x32xi1> to vector<16x32xi32>
    %14 = arith.sitofp %13 : vector<16x32xi32> to vector<16x32xf32>
    %15 = arith.mulf %14, %5 : vector<16x32xf32>
    %cst_4 = arith.constant dense<0.000000e+00> : vector<16xf32>
    %16 = vector.multi_reduction <add>, %15, %cst_4 [1] : vector<16x32xf32> to vector<16xf32>
    %17 = vector.shape_cast %16 : vector<16xf32> to vector<16x1xf32>
    %18 = arith.subf %17, %9 : vector<16x1xf32>
    %19 = math.exp %18 : vector<16x1xf32>
    %cst_5 = arith.constant 1.000000e+00 : f32
    %20 = vector.broadcast %cst_5 : f32 to vector<16x1xf32>
    %21 = arith.subf %20, %19 : vector<16x1xf32>
    %cst_6 = arith.constant 1.000000e+00 : f32
    %22 = vector.broadcast %cst_6 : f32 to vector<16x1xf32>
    %23 = arith.mulf %22, %21 : vector<16x1xf32>
    %24 = arith.mulf %23, %21 : vector<16x1xf32>
    %25 = arith.mulf %24, %18 : vector<16x1xf32>
    %cst_7 = arith.constant 0.000000e+00 : f32
    %26 = vector.broadcast %cst_7 : f32 to vector<16x1xf32>
    %27 = arith.subf %26, %25 : vector<16x1xf32>
    %c16_i32 = arith.constant 16 : i32
    %28 = arith.muli %arg0, %c16_i32 : i32
    %29 = tpu.iota {dimensions = array<i32: 0>} : vector<16x1xi32>
    %30 = vector.broadcast %28 : i32 to vector<16x1xi32>
    %31 = arith.addi %30, %29 : vector<16x1xi32>
    %c16_i32_8 = arith.constant 16 : i32
    %32 = vector.broadcast %c16_i32_8 : i32 to vector<16x1xi32>
    %33 = arith.cmpi slt, %31, %32 : vector<16x1xi32>
    %c-100_i32 = arith.constant -100 : i32
    %34 = vector.broadcast %c-100_i32 : i32 to vector<16x1xi32>
    %35 = arith.cmpi ne, %1, %34 : vector<16x1xi32>
    %36 = arith.andi %33, %35 : vector<16x1xi1>
    %cst_9 = arith.constant 0.000000e+00 : f32
    %37 = vector.broadcast %cst_9 : f32 to vector<16x1xf32>
    %38 = arith.select %36, %27, %37 : vector<16x1xi1>, vector<16x1xf32>
    %39 = arith.extui %36 : vector<16x1xi1> to vector<16x1xi32>
    %40 = arith.sitofp %39 : vector<16x1xi32> to vector<16x1xf32>
    %41 = vector.shape_cast %38 : vector<16x1xf32> to vector<1x16x1xf32>
    %cst_10 = arith.constant dense<0.000000e+00> : vector<1xf32>
    %42 = vector.multi_reduction <add>, %41, %cst_10 [1, 2] : vector<1x16x1xf32> to vector<1xf32>
    %43 = vector.shape_cast %42 : vector<1xf32> to vector<1x1x1xf32>
    %44 = vector.extract %43[0, 0, 0] : f32 from vector<1x1x1xf32>
    %45 = vector.shape_cast %40 : vector<16x1xf32> to vector<1x16x1xf32>
    %cst_11 = arith.constant dense<0.000000e+00> : vector<1xf32>
    %46 = vector.multi_reduction <add>, %45, %cst_11 [1, 2] : vector<1x16x1xf32> to vector<1xf32>
    %47 = vector.shape_cast %46 : vector<1xf32> to vector<1x1x1xf32>
    %48 = vector.extract %47[0, 0, 0] : f32 from vector<1x1x1xf32>
    %49 = tpu.iota {dimensions = array<i32: 0>} : vector<8x128xi32>
    %50 = tpu.iota {dimensions = array<i32: 1>} : vector<8x128xi32>
    %c0_i32 = arith.constant 0 : i32
    %51 = vector.broadcast %c0_i32 : i32 to vector<8x128xi32>
    %52 = arith.cmpi eq, %49, %51 : vector<8x128xi32>
    %c0_i32_12 = arith.constant 0 : i32
    %53 = vector.broadcast %c0_i32_12 : i32 to vector<8x128xi32>
    %54 = arith.cmpi eq, %50, %53 : vector<8x128xi32>
    %55 = arith.andi %52, %54 : vector<8x128xi1>
    %cst_13 = arith.constant 0.000000e+00 : f32
    %56 = vector.broadcast %44 : f32 to vector<8x128xf32>
    %57 = vector.broadcast %cst_13 : f32 to vector<8x128xf32>
    %58 = arith.select %55, %56, %57 : vector<8x128xi1>, vector<8x128xf32>
    %c0_i32_14 = arith.constant 0 : i32
    %59 = vector.broadcast %c0_i32_14 : i32 to vector<8x128xi32>
    %60 = arith.cmpi eq, %49, %59 : vector<8x128xi32>
    %c1_i32 = arith.constant 1 : i32
    %61 = vector.broadcast %c1_i32 : i32 to vector<8x128xi32>
    %62 = arith.cmpi eq, %50, %61 : vector<8x128xi32>
    %63 = arith.andi %60, %62 : vector<8x128xi1>
    %cst_15 = arith.constant 0.000000e+00 : f32
    %64 = vector.broadcast %48 : f32 to vector<8x128xf32>
    %65 = vector.broadcast %cst_15 : f32 to vector<8x128xf32>
    %66 = arith.select %63, %64, %65 : vector<8x128xi1>, vector<8x128xf32>
    %67 = arith.addf %58, %66 : vector<8x128xf32>
    %c0_16 = arith.constant 0 : index
    %c0_17 = arith.constant 0 : index
    %c0_18 = arith.constant 0 : index
    %68 = vector.load %arg3[%c0_16, %c0_17, %c0_18] : memref<1x8x128xf32, #tpu.memory_space<vmem>>, vector<1x8x128xf32>
    %69 = vector.shape_cast %68 : vector<1x8x128xf32> to vector<8x128xf32>
    %70 = vector.shape_cast %67 : vector<8x128xf32> to vector<1x8x128xf32>
    tpu.vector_store %arg3[%c0_16, %c0_17, %c0_18], %70 {strides = array<i32>} : memref<1x8x128xf32, #tpu.memory_space<vmem>>, vector<1x8x128xf32>,
    return
  }
  func.func @transform_0(%arg0: i32) -> (i32, i32) {
    %c0_i32 = arith.constant 0 : i32
    %c0_i32_0 = arith.constant 0 : i32
    return %arg0, %c0_i32 : i32, i32
  }
  func.func @transform_1(%arg0: i32) -> (i32, i32) {
    %c0_i32 = arith.constant 0 : i32
    %c0_i32_0 = arith.constant 0 : i32
    return %arg0, %c0_i32 : i32, i32
  }
  func.func @transform_2(%arg0: i32) -> (i32, i32, i32) {
    %c0_i32 = arith.constant 0 : i32
    %c0_i32_0 = arith.constant 0 : i32
    %c0_i32_1 = arith.constant 0 : i32
    return %arg0, %c0_i32, %c0_i32_0 : i32, i32, i32
  }
}

</mosaic_0001>

<llo_original>
// kernel: tpu_custom_call.1
$region0: #{tpu_custom_call.1}
  #allocation0 [shape = 'u32[]', space=smem, size = 0x4, offset = 0x4, fixed_abs, tag = 'smem constant byte address 0x4 - core index']
  #allocation1 [shape = 'u32[144,128]{1,0:T(1,128)}', space=vmem, size = 0x12000, scoped, tag = 'internal scratch']
  %s0 = inlined_call_operand.vmem [shape: f32[16,32], index: 0, kind: input, shape index: {}]
  %s1 = inlined_call_operand.vmem [shape: s32[16,1], index: 1, kind: input, shape index: {}]
  %s2 = inlined_call_operand.hbm [shape: f32[1,8,128], index: 2, kind: output, shape index: {}]
  %s3 = sld [smem:[#allocation0]]
  $region18: #{tpu_custom_call.1} parent=0
    _
  %s5 = ssub.s32 1, %s3
  %s6 = scalar_select 0, %s5, %s3
  $region1: #{tpu_custom_call.1} parent=0
    #allocation2 [shape = 'u8[4096]{0}', space=vmem, size = 0x1000, scoped, tag = 'output window, operand 0, single buffered']
    #allocation3 [shape = 's32[1]{0}', space=sflag, size = 0x4, scoped, tag = 'scoped memory for tpu_custom_call.1']
    %7 = vsyncpa [#allocation3], 0
    // Predicated region
    $region2: #{tpu_custom_call.1} parent=1 // pred_check
      _
    $region3: #{tpu_custom_call.1} parent=1 // pred_check_branch
      %9 = sbr.rel (0) target = $region5
    $region4: #{tpu_custom_call.1} parent=1 // pred_region
      _
    $region5: #{tpu_custom_call.1} parent=1 // pred_fallthru
      _
    // Predicated region
    $region6: #{tpu_custom_call.1} parent=1 // pred_check
      _
    $region7: #{tpu_custom_call.1} parent=1 // pred_check_branch
      %11 = sbr.rel (0) target = $region9
    $region8: #{tpu_custom_call.1} parent=1 // pred_region
      _
    $region9: #{tpu_custom_call.1} parent=1 // pred_fallthru
      _
    %v12 = vld [vmem:[%s0] sm:$0xff]
    %v13 = vld [vmem:[%s0 + $0x8] sm:$0xff]
    %v14 = vld [vmem:[%s1] sm:$0xff]
    %v15 = vld [vmem:[%s1 + $0x8] sm:$0xff]
    %vm16 = vcmask 261120
    %v17 = vsel %vm16, %v12, -inf
    %18 = vmax.xlane.f32.xlu0 %v17
    %v19 = vpop.xlane.xlu0 %18
    %v20 = vsel %vm16, %v13, -inf
    %21 = vmax.xlane.f32.xlu0 %v20
    %v22 = vpop.xlane.xlu0 %21
    %v23 = vsub.f32 %v12, %v19
    %v24 = vsub.f32 %v13, %v22
    %v25 = vmul.f32 %v23, 1.442695
    %v26 = vpow.pop %v25
    %v27 = vmul.f32 %v24, 1.442695
    %v28 = vpow.pop %v27
    %v29 = vsel %vm16, %v26, 0.0
    %30 = vadd.xlane.f32.xlu0 %v29
    %v31 = vpop.xlane.xlu0 %30
    %v32 = vsel %vm16, %v28, 0.0
    %33 = vadd.xlane.f32.xlu0 %v32
    %v34 = vpop.xlane.xlu0 %33
    %v35 = vlog2.pop %v31
    %v36 = vmul.f32 %v35, 0.6931472
    %v37 = vlog2.pop %v34
    %v38 = vmul.f32 %v37, 0.6931472
    %v39 = vlaneseq
    %v40 = vand.u32 %v39, 127
    %41 = vset.pattern.permute.xlu0 0
    %42 = vperm.xlu0 %41, %v14
    %v43 = vpop.permute.xlu0 %42
    %44 = vset.pattern.permute.xlu0 0
    %45 = vperm.xlu0 %44, %v15
    %v46 = vpop.permute.xlu0 %45
    %vm47 = vcmp.eq.s32.totalorder %v40, %v43
    %vm48 = vcmp.eq.s32.totalorder %v40, %v46
    %v49 = vsel %vm47, 1, 0
    %v50 = vsel %vm48, 1, 0
    %v51 = vcvt.s32.f32 %v49
    %v52 = vcvt.s32.f32 %v50
    %v53 = vmul.f32 %v51, %v23
    %v54 = vmul.f32 %v52, %v24
    %v55 = vsel %vm16, %v53, 0.0
    %56 = vadd.xlane.f32.xlu0 %v55
    %v57 = vpop.xlane.xlu0 %56
    %v58 = vsel %vm16, %v54, 0.0
    %59 = vadd.xlane.f32.xlu0 %v58
    %v60 = vpop.xlane.xlu0 %59
    %v61 = vsub.f32 %v57, %v36
    %v62 = vsub.f32 %v60, %v38
    %v63 = vmul.f32 %v61, 1.442695
    %v64 = vpow.pop %v63
    %v65 = vmul.f32 %v62, 1.442695
    %v66 = vpow.pop %v65
    %v67 = vsub.f32 1.0, %v64
    %v68 = vsub.f32 1.0, %v66
    %v69 = vmul.f32 %v67, %v67
    %v70 = vmul.f32 %v68, %v68
    %v71 = vmul.f32 %v69, %v61
    %v72 = vmul.f32 %v70, %v62
    %v73 = vsub.f32 0.0, %v71
    %v74 = vsub.f32 0.0, %v72
    %s75 = smul.u32 0, 16
    %v76 = vlaneseq
    %v77 = vshrl.u32 %v76, 7
    %v78 = vadd.s32 %v77, 8
    %v79 = vstv %s75
    %v80 = vadd.s32 %v79, %v77
    %v81 = vadd.s32 %v79, %v78
    %vm82 = vcmp.lt.s32.totalorder %v80, 16
    %vm83 = vcmp.lt.s32.totalorder %v81, 16
    %vm84 = vcmp.ne.s32.totalorder %v14, 4294967196
    %vm85 = vcmp.ne.s32.totalorder %v15, 4294967196
    %vm86 = vmand %vm82, %vm84
    %vm87 = vmand %vm83, %vm85
    %v88 = vsel %vm86, %v73, 0.0
    %v89 = vsel %vm87, %v74, 0.0
    %v90 = vsel %vm86, 1, 0
    %v91 = vsel %vm87, 1, 0
    %v92 = vcvt.s32.f32 %v90
    %v93 = vcvt.s32.f32 %v91
    %vm94 = vcmask 7168
    %v95 = vsel %vm94, %v88, 0.0
    %v96 = vsel %vm94, %v89, 0.0
    %v97 = vadd.f32 %v95, %v96
    %98 = vadd.xlane.f32.xlu0 %v97
    %v99 = vpop.xlane.xlu0 %98
    %v100 = vrot.slane %v99, 4
    %v101 = vadd.f32 %v99, %v100
    %v102 = vrot.slane %v101, 2
    %v103 = vadd.f32 %v101, %v102
    %v104 = vrot.slane %v103, 1
    %v105 = vadd.f32 %v103, %v104
    %s106 = vtos %v105
    %v107 = vsel %vm94, %v92, 0.0
    %v108 = vsel %vm94, %v93, 0.0
    %v109 = vadd.f32 %v107, %v108
    %110 = vadd.xlane.f32.xlu0 %v109
    %v111 = vpop.xlane.xlu0 %110
    %v112 = vrot.slane %v111, 4
    %v113 = vadd.f32 %v111, %v112
    %v114 = vrot.slane %v113, 2
    %v115 = vadd.f32 %v113, %v114
    %v116 = vrot.slane %v115, 1
    %v117 = vadd.f32 %v115, %v116
    %s118 = vtos %v117
    %vm119 = vcmp.eq.s32.totalorder %v77, 0
    %vm120 = vcmp.eq.s32.totalorder %v40, 0
    %vm121 = vmand %vm119, %vm120
    %v122 = vstv %s106
    %v123 = vsel %vm121, %v122, 0.0
    %vm124 = vcmp.eq.s32.totalorder %v40, 1
    %vm125 = vmand %vm119, %vm124
    %v126 = vstv %s118
    %v127 = vsel %vm125, %v126, 0.0
    %v128 = vadd.f32 %v123, %v127
    %129 = vst [vmem:[#allocation2] sm:$0xff] %v128
    // Predicated region
    $region10: #{tpu_custom_call.1} parent=1 // pred_check
      _
    $region11: #{tpu_custom_call.1} parent=1 // pred_check_branch
      %131 = sbr.rel (0) target = $region13
    $region12: #{tpu_custom_call.1} parent=1 // pred_region
      %s133 = ssub.s32 128, 128
      %134 = vsyncadd [#allocation3], %s133
      %s136 = sshll.u32 [#allocation2], 4
      %s137 = int_to_ptr.vmem [resolvable:$true] %s136
      %139 = dma.vmem_to_hbm [thread:$0]  %s137, 128, %s2, [#allocation3]
    $region13: #{tpu_custom_call.1} parent=1 // pred_fallthru
      _
    // Predicated region
    $region14: #{tpu_custom_call.1} parent=1 // pred_check
      _
    $region15: #{tpu_custom_call.1} parent=1 // pred_check_branch
      %141 = sbr.rel (0) target = $region17
    $region16: #{tpu_custom_call.1} parent=1 // pred_region
      %142 = dma.done [#allocation3], 128
    $region17: #{tpu_custom_call.1} parent=1 // pred_fallthru
      _
    %143 = vsyncpa [#allocation3], 1

</llo_original>
